<compile_context>
chip_gen: v5e
topology: v5e:2x2
jax: 0.10.0
libtpu: 0.0.40
codegen_flags: <defaults>
</compile_context>

<pallas_src>
import functools

import jax
import jax.numpy as jnp
from jax.experimental import pallas as pl
from jax.experimental.pallas import tpu as pltpu


NEG_SLOPE = 0.01          # torch.nn.LeakyReLU default negative_slope
_LANES = 128
_MAX_BLOCK_ROWS = 1024    # 1024 rows * 128 samples -> ~1 MB f32 x-tile (in_feat=2)


def _choose_tiling(B):
    """Batch of B samples -> (padded_row_count, rows_per_tile); 1 row = 128 samples."""
    nb = -(-B // _LANES)                      # ceil rows of 128 samples
    if nb <= 8:
        return nb, nb                         # one tiny tile (full-dim block is legal)
    nb8 = -(-nb // 8) * 8                     # full-sublane row count
    target = min(_MAX_BLOCK_ROWS, max(8, nb8 // 2))   # >=2 tiles when possible (v7x: 2 TCs)
    blk = 8
    for c in range(8, target + 1, 8):         # largest multiple-of-8 divisor <= target
        if nb8 % c == 0:
            blk = c
    # Awkward row counts (e.g. 8*prime) would otherwise give many tiny tiles:
    # pad the batch instead so tiles stay large and per-step overhead amortizes.
    if blk < 64 and nb8 // blk > 8:
        blk = (target // 8) * 8
    nb_pad = -(-nb8 // blk) * blk
    return nb_pad, blk


def _disc_kernel(x_ref, p_ref, o_ref, *, dims, offs):
    """Whole 5-layer MLP on one batch tile, entirely in VMEM/VPU.

    x_ref: VMEM [in_feat, rows, 128]  (feature planes; batch dense in vregs)
    p_ref: SMEM [n_params]            (all weights + biases, flat f32)
    o_ref: VMEM [rows, 128]
    dims:  static ((fan_out, fan_in), ...) per layer
    offs:  static ((w_off, b_off), ...)    per layer into p_ref
    """
    in_feat = x_ref.shape[0]
    h = [x_ref[i] for i in range(in_feat)]            # each [rows, 128], full vregs
    n_layers = len(dims)
    for li, (fan_out, fan_in) in enumerate(dims):
        w_off, b_off = offs[li]
        act = li < n_layers - 1
        nxt = []
        for o in range(fan_out):
            # scalar (SMEM) * vector (VPU), bias folded into the first term
            v = p_ref[w_off + o * fan_in] * h[0] + p_ref[b_off + o]
            for i in range(1, fan_in):
                v = v + p_ref[w_off + o * fan_in + i] * h[i]
            if act:
                v = jnp.maximum(v, NEG_SLOPE * v)      # LeakyReLU (slope < 1)
            nxt.append(v)
        h = nxt
    o_ref[...] = h[0]                                  # final fan_out == 1, dense store


@jax.jit
def discriminator_forward(x, params):
    """x: [B, in_feat] float. Returns [B, 1] float32 (matches PyTorch output)."""
    B, in_feat = x.shape
    dims = tuple(tuple(params[f"w{i}"].shape) for i in range(1, 6))
    assert dims[0][1] == in_feat and dims[-1][0] == 1
    # Guard: unrolled VPU path targets the module's tiny default sizes.
    # TODO(synk): switch these layers to an MXU jnp.dot path if latent >= ~8.
    assert max(max(d) for d in dims) <= 32, "unrolled path expects small layers"

    # Pack all weights + biases into one flat f32 SMEM operand (static offsets).
    flat, offs, pos = [], [], 0
    for i in range(1, 6):
        w, b = params[f"w{i}"], params[f"b{i}"]
        offs.append((pos, pos + w.size))
        flat.append(w.reshape(-1))
        flat.append(b.reshape(-1))
        pos += w.size + b.size
    packed = jnp.concatenate(flat).astype(jnp.float32)

    nb_pad, blk = _choose_tiling(B)
    B_pad = nb_pad * _LANES
    xp = x.astype(jnp.float32)
    if B_pad != B:
        xp = jnp.pad(xp, ((0, B_pad - B), (0, 0)))
    # [B, F] -> [F, B/128, 128]; the reshape of the transposed result is a
    # bitcast, and allow_input_fusion lets XLA fuse the transpose into the
    # pallas_call input rather than spending an extra HBM pass.
    xT = xp.T.reshape(in_feat, nb_pad, _LANES)

    grid = (nb_pad // blk,)
    kernel = functools.partial(_disc_kernel, dims=dims, offs=tuple(offs))

    out = pl.pallas_call(
        kernel,
        out_shape=jax.ShapeDtypeStruct((nb_pad, _LANES), jnp.float32),
        grid_spec=pltpu.PrefetchScalarGridSpec(
            num_scalar_prefetch=0,
            grid=grid,
            in_specs=[
                pl.BlockSpec((in_feat, blk, _LANES), lambda j: (0, j, 0)),
                pl.BlockSpec(memory_space=pltpu.MemorySpace.SMEM),
            ],
            out_specs=pl.BlockSpec((blk, _LANES), lambda j: (j, 0)),
        ),
        compiler_params=pltpu.CompilerParams(
            dimension_semantics=("parallel",),
            allow_input_fusion=[True, False],
        ),
    )(xT, packed)

    out = out.reshape(B_pad, 1)            # bitcast, not a transpose
    return out if B_pad == B else out[:B]


def init_params(key, in_feat, latent):
    """torch.nn.Linear-style init: U(-1/sqrt(fan_in), 1/sqrt(fan_in)).

    Weights kept in PyTorch layout [fan_out, fan_in]; biases as [fan_out]."""
    dims = [(latent, in_feat), (latent, latent), (latent, latent),
            (latent, latent), (1, latent)]
    params = {}
    for idx, (fan_out, fan_in) in enumerate(dims, start=1):
        key, kw, kb = jax.random.split(key, 3)
        bound = 1.0 / float(fan_in) ** 0.5
        params[f"w{idx}"] = jax.random.uniform(
            kw, (fan_out, fan_in), jnp.float32, minval=-bound, maxval=bound)
        params[f"b{idx}"] = jax.random.uniform(
            kb, (fan_out,), jnp.float32, minval=-bound, maxval=bound)
    return params


def reference_forward(x, params):
    h = x
    for idx in range(1, 5):
        z = h @ params[f"w{idx}"].T + params[f"b{idx}"]
        h = jnp.where(z >= 0, z, NEG_SLOPE * z)
    return h @ params["w5"].T + params["b5"]


if __name__ == "__main__":
    # Module defaults: in_feat=2, latent=2; small batch.
    B, IN_FEAT, LATENT = 128, 2, 2

    key = jax.random.PRNGKey(0)
    key, kx = jax.random.split(key)
    x = jax.random.normal(kx, (B, IN_FEAT), jnp.float32)
    params = init_params(key, IN_FEAT, LATENT)

    out = discriminator_forward(x, params)
    out = jax.block_until_ready(out)

    ref = reference_forward(x, params)
    assert out.shape == (B, 1), out.shape
    assert jnp.allclose(out, ref, atol=1e-5, rtol=1e-5), \
        f"max err {jnp.max(jnp.abs(out - ref))}"

    print("KERNEL_OK")
</pallas_src>

<mosaic_0001>
module attributes {stable_mosaic.version = 11 : i64} {
  func.func @_disc_kernel(%arg0: i32, %arg1: memref<2x1x128xf32, #tpu.memory_space<vmem>>, %arg2: memref<27xf32, #tpu.memory_space<smem>>, %arg3: memref<1x128xf32, #tpu.memory_space<vmem>>) attributes {dimension_semantics = [#tpu.dimension_semantics<parallel>], iteration_bounds = array<i64: 1>, scalar_prefetch = 0 : i64, scratch_operands = 0 : i64, tpu.core_type = #tpu.core_type<tc>, window_params = [{transform_indices = @transform_0, window_bounds = array<i64: 2, 1, 128>}, {transform_indices = @transform_1, window_bounds = array<i64: 27>}, {transform_indices = @transform_2, window_bounds = array<i64: 1, 128>}]} {
    %c0 = arith.constant 0 : index
    %c0_0 = arith.constant 0 : index
    %c0_1 = arith.constant 0 : index
    %0 = vector.load %arg1[%c0, %c0_0, %c0_1] : memref<2x1x128xf32, #tpu.memory_space<vmem>>, vector<1x1x128xf32>
    %1 = vector.shape_cast %0 : vector<1x1x128xf32> to vector<1x128xf32>
    %c1 = arith.constant 1 : index
    %c0_2 = arith.constant 0 : index
    %c0_3 = arith.constant 0 : index
    %2 = vector.load %arg1[%c1, %c0_2, %c0_3] : memref<2x1x128xf32, #tpu.memory_space<vmem>>, vector<1x1x128xf32>
    %3 = vector.shape_cast %2 : vector<1x1x128xf32> to vector<1x128xf32>
    %c0_4 = arith.constant 0 : index
    %4 = memref.load %arg2[%c0_4] : memref<27xf32, #tpu.memory_space<smem>>
    %5 = vector.broadcast %4 : f32 to vector<1x128xf32>
    %6 = arith.mulf %5, %1 : vector<1x128xf32>
    %c4 = arith.constant 4 : index
    %7 = memref.load %arg2[%c4] : memref<27xf32, #tpu.memory_space<smem>>
    %8 = vector.broadcast %7 : f32 to vector<1x128xf32>
    %9 = arith.addf %6, %8 : vector<1x128xf32>
    %c1_5 = arith.constant 1 : index
    %10 = memref.load %arg2[%c1_5] : memref<27xf32, #tpu.memory_space<smem>>
    %11 = vector.broadcast %10 : f32 to vector<1x128xf32>
    %12 = arith.mulf %11, %3 : vector<1x128xf32>
    %13 = arith.addf %9, %12 : vector<1x128xf32>
    %cst = arith.constant 0.00999999977 : f32
    %14 = vector.broadcast %cst : f32 to vector<1x128xf32>
    %15 = arith.mulf %14, %13 : vector<1x128xf32>
    %16 = arith.maximumf %13, %15 : vector<1x128xf32>
    %c2 = arith.constant 2 : index
    %17 = memref.load %arg2[%c2] : memref<27xf32, #tpu.memory_space<smem>>
    %18 = vector.broadcast %17 : f32 to vector<1x128xf32>
    %19 = arith.mulf %18, %1 : vector<1x128xf32>
    %c5 = arith.constant 5 : index
    %20 = memref.load %arg2[%c5] : memref<27xf32, #tpu.memory_space<smem>>
    %21 = vector.broadcast %20 : f32 to vector<1x128xf32>
    %22 = arith.addf %19, %21 : vector<1x128xf32>
    %c3 = arith.constant 3 : index
    %23 = memref.load %arg2[%c3] : memref<27xf32, #tpu.memory_space<smem>>
    %24 = vector.broadcast %23 : f32 to vector<1x128xf32>
    %25 = arith.mulf %24, %3 : vector<1x128xf32>
    %26 = arith.addf %22, %25 : vector<1x128xf32>
    %cst_6 = arith.constant 0.00999999977 : f32
    %27 = vector.broadcast %cst_6 : f32 to vector<1x128xf32>
    %28 = arith.mulf %27, %26 : vector<1x128xf32>
    %29 = arith.maximumf %26, %28 : vector<1x128xf32>
    %c6 = arith.constant 6 : index
    %30 = memref.load %arg2[%c6] : memref<27xf32, #tpu.memory_space<smem>>
    %31 = vector.broadcast %30 : f32 to vector<1x128xf32>
    %32 = arith.mulf %31, %16 : vector<1x128xf32>
    %c10 = arith.constant 10 : index
    %33 = memref.load %arg2[%c10] : memref<27xf32, #tpu.memory_space<smem>>
    %34 = vector.broadcast %33 : f32 to vector<1x128xf32>
    %35 = arith.addf %32, %34 : vector<1x128xf32>
    %c7 = arith.constant 7 : index
    %36 = memref.load %arg2[%c7] : memref<27xf32, #tpu.memory_space<smem>>
    %37 = vector.broadcast %36 : f32 to vector<1x128xf32>
    %38 = arith.mulf %37, %29 : vector<1x128xf32>
    %39 = arith.addf %35, %38 : vector<1x128xf32>
    %cst_7 = arith.constant 0.00999999977 : f32
    %40 = vector.broadcast %cst_7 : f32 to vector<1x128xf32>
    %41 = arith.mulf %40, %39 : vector<1x128xf32>
    %42 = arith.maximumf %39, %41 : vector<1x128xf32>
    %c8 = arith.constant 8 : index
    %43 = memref.load %arg2[%c8] : memref<27xf32, #tpu.memory_space<smem>>
    %44 = vector.broadcast %43 : f32 to vector<1x128xf32>
    %45 = arith.mulf %44, %16 : vector<1x128xf32>
    %c11 = arith.constant 11 : index
    %46 = memref.load %arg2[%c11] : memref<27xf32, #tpu.memory_space<smem>>
    %47 = vector.broadcast %46 : f32 to vector<1x128xf32>
    %48 = arith.addf %45, %47 : vector<1x128xf32>
    %c9 = arith.constant 9 : index
    %49 = memref.load %arg2[%c9] : memref<27xf32, #tpu.memory_space<smem>>
    %50 = vector.broadcast %49 : f32 to vector<1x128xf32>
    %51 = arith.mulf %50, %29 : vector<1x128xf32>
    %52 = arith.addf %48, %51 : vector<1x128xf32>
    %cst_8 = arith.constant 0.00999999977 : f32
    %53 = vector.broadcast %cst_8 : f32 to vector<1x128xf32>
    %54 = arith.mulf %53, %52 : vector<1x128xf32>
    %55 = arith.maximumf %52, %54 : vector<1x128xf32>
    %c12 = arith.constant 12 : index
    %56 = memref.load %arg2[%c12] : memref<27xf32, #tpu.memory_space<smem>>
    %57 = vector.broadcast %56 : f32 to vector<1x128xf32>
    %58 = arith.mulf %57, %42 : vector<1x128xf32>
    %c16 = arith.constant 16 : index
    %59 = memref.load %arg2[%c16] : memref<27xf32, #tpu.memory_space<smem>>
    %60 = vector.broadcast %59 : f32 to vector<1x128xf32>
    %61 = arith.addf %58, %60 : vector<1x128xf32>
    %c13 = arith.constant 13 : index
    %62 = memref.load %arg2[%c13] : memref<27xf32, #tpu.memory_space<smem>>
    %63 = vector.broadcast %62 : f32 to vector<1x128xf32>
    %64 = arith.mulf %63, %55 : vector<1x128xf32>
    %65 = arith.addf %61, %64 : vector<1x128xf32>
    %cst_9 = arith.constant 0.00999999977 : f32
    %66 = vector.broadcast %cst_9 : f32 to vector<1x128xf32>
    %67 = arith.mulf %66, %65 : vector<1x128xf32>
    %68 = arith.maximumf %65, %67 : vector<1x128xf32>
    %c14 = arith.constant 14 : index
    %69 = memref.load %arg2[%c14] : memref<27xf32, #tpu.memory_space<smem>>
    %70 = vector.broadcast %69 : f32 to vector<1x128xf32>
    %71 = arith.mulf %70, %42 : vector<1x128xf32>
    %c17 = arith.constant 17 : index
    %72 = memref.load %arg2[%c17] : memref<27xf32, #tpu.memory_space<smem>>
    %73 = vector.broadcast %72 : f32 to vector<1x128xf32>
    %74 = arith.addf %71, %73 : vector<1x128xf32>
    %c15 = arith.constant 15 : index
    %75 = memref.load %arg2[%c15] : memref<27xf32, #tpu.memory_space<smem>>
    %76 = vector.broadcast %75 : f32 to vector<1x128xf32>
    %77 = arith.mulf %76, %55 : vector<1x128xf32>
    %78 = arith.addf %74, %77 : vector<1x128xf32>
    %cst_10 = arith.constant 0.00999999977 : f32
    %79 = vector.broadcast %cst_10 : f32 to vector<1x128xf32>
    %80 = arith.mulf %79, %78 : vector<1x128xf32>
    %81 = arith.maximumf %78, %80 : vector<1x128xf32>
    %c18 = arith.constant 18 : index
    %82 = memref.load %arg2[%c18] : memref<27xf32, #tpu.memory_space<smem>>
    %83 = vector.broadcast %82 : f32 to vector<1x128xf32>
    %84 = arith.mulf %83, %68 : vector<1x128xf32>
    %c22 = arith.constant 22 : index
    %85 = memref.load %arg2[%c22] : memref<27xf32, #tpu.memory_space<smem>>
    %86 = vector.broadcast %85 : f32 to vector<1x128xf32>
    %87 = arith.addf %84, %86 : vector<1x128xf32>
    %c19 = arith.constant 19 : index
    %88 = memref.load %arg2[%c19] : memref<27xf32, #tpu.memory_space<smem>>
    %89 = vector.broadcast %88 : f32 to vector<1x128xf32>
    %90 = arith.mulf %89, %81 : vector<1x128xf32>
    %91 = arith.addf %87, %90 : vector<1x128xf32>
    %cst_11 = arith.constant 0.00999999977 : f32
    %92 = vector.broadcast %cst_11 : f32 to vector<1x128xf32>
    %93 = arith.mulf %92, %91 : vector<1x128xf32>
    %94 = arith.maximumf %91, %93 : vector<1x128xf32>
    %c20 = arith.constant 20 : index
    %95 = memref.load %arg2[%c20] : memref<27xf32, #tpu.memory_space<smem>>
    %96 = vector.broadcast %95 : f32 to vector<1x128xf32>
    %97 = arith.mulf %96, %68 : vector<1x128xf32>
    %c23 = arith.constant 23 : index
    %98 = memref.load %arg2[%c23] : memref<27xf32, #tpu.memory_space<smem>>
    %99 = vector.broadcast %98 : f32 to vector<1x128xf32>
    %100 = arith.addf %97, %99 : vector<1x128xf32>
    %c21 = arith.constant 21 : index
    %101 = memref.load %arg2[%c21] : memref<27xf32, #tpu.memory_space<smem>>
    %102 = vector.broadcast %101 : f32 to vector<1x128xf32>
    %103 = arith.mulf %102, %81 : vector<1x128xf32>
    %104 = arith.addf %100, %103 : vector<1x128xf32>
    %cst_12 = arith.constant 0.00999999977 : f32
    %105 = vector.broadcast %cst_12 : f32 to vector<1x128xf32>
    %106 = arith.mulf %105, %104 : vector<1x128xf32>
    %107 = arith.maximumf %104, %106 : vector<1x128xf32>
    %c24 = arith.constant 24 : index
    %108 = memref.load %arg2[%c24] : memref<27xf32, #tpu.memory_space<smem>>
    %109 = vector.broadcast %108 : f32 to vector<1x128xf32>
    %110 = arith.mulf %109, %94 : vector<1x128xf32>
    %c26 = arith.constant 26 : index
    %111 = memref.load %arg2[%c26] : memref<27xf32, #tpu.memory_space<smem>>
    %112 = vector.broadcast %111 : f32 to vector<1x128xf32>
    %113 = arith.addf %110, %112 : vector<1x128xf32>
    %c25 = arith.constant 25 : index
    %114 = memref.load %arg2[%c25] : memref<27xf32, #tpu.memory_space<smem>>
    %115 = vector.broadcast %114 : f32 to vector<1x128xf32>
    %116 = arith.mulf %115, %107 : vector<1x128xf32>
    %117 = arith.addf %113, %116 : vector<1x128xf32>
    %c0_13 = arith.constant 0 : index
    %c0_14 = arith.constant 0 : index
    %118 = vector.load %arg3[%c0_13, %c0_14] : memref<1x128xf32, #tpu.memory_space<vmem>>, vector<1x128xf32>
    tpu.vector_store %arg3[%c0_13, %c0_14], %117 {strides = array<i32>} : memref<1x128xf32, #tpu.memory_space<vmem>>, vector<1x128xf32>,
    return
  }
  func.func @transform_0(%arg0: i32) -> (i32, i32, i32) {
    %c0_i32 = arith.constant 0 : i32
    %c0_i32_0 = arith.constant 0 : i32
    %c0_i32_1 = arith.constant 0 : i32
    return %c0_i32, %arg0, %c0_i32_0 : i32, i32, i32
  }
  func.func @transform_1(%arg0: i32) -> i32 {
    %c0_i32 = arith.constant 0 : i32
    %c0_i32_0 = arith.constant 0 : i32
    return %c0_i32 : i32
  }
  func.func @transform_2(%arg0: i32) -> (i32, i32) {
    %c0_i32 = arith.constant 0 : i32
    %c0_i32_0 = arith.constant 0 : i32
    return %arg0, %c0_i32 : i32, i32
  }
}

</mosaic_0001>

<llo_original>
// kernel: discriminator_forward.1
$region0: #{discriminator_forward.1}
  #allocation0 [shape = 'u32[]', space=smem, size = 0x4, offset = 0x4, fixed_abs, tag = 'smem constant byte address 0x4 - core index']
  #allocation1 [shape = 'u32[72,128]{1,0:T(1,128)}', space=vmem, size = 0x9000, scoped, tag = 'internal scratch']
  %s0 = inlined_call_operand.vmem [shape: f32[2,1,128], index: 0, kind: input, shape index: {}]
  %s1 = inlined_call_operand.vmem [shape: f32[27], index: 1, kind: input, shape index: {}]
  %s2 = inlined_call_operand.hbm [shape: f32[1,128], index: 2, kind: output, shape index: {}]
  %s3 = sld [smem:[#allocation0]]
  $region22: #{discriminator_forward.1} parent=0
    _
  %s5 = ssub.s32 1, %s3
  %s6 = scalar_select 0, %s5, %s3
  $region1: #{discriminator_forward.1} parent=0
    #allocation2 [shape = 'u8[512]{0}', space=smem, size = 0x200, scoped, tag = 'input window, operand 1, single buffered']
    #allocation3 [shape = 's32[1]{0}', space=sflag, size = 0x4, scoped, tag = 'scoped memory for discriminator_forward.1']
    #allocation4 [shape = 's32[1]{0}', space=sflag, size = 0x4, scoped, tag = 'scoped memory for discriminator_forward.1']
    #allocation5 [shape = 'u8[512]{0}', space=vmem, size = 0x400, scoped, tag = 'output window, operand 0, single buffered']
    %7 = vsyncpa [#allocation4], 0
    %8 = vsyncpa [#allocation3], 0
    // Predicated region
    $region2: #{discriminator_forward.1} parent=1 // pred_check
      _
    $region3: #{discriminator_forward.1} parent=1 // pred_check_branch
      %10 = sbr.rel (0) target = $region5
    $region4: #{discriminator_forward.1} parent=1 // pred_region
      _
    $region5: #{discriminator_forward.1} parent=1 // pred_fallthru
      _
    // Predicated region
    $region6: #{discriminator_forward.1} parent=1 // pred_check
      _
    $region7: #{discriminator_forward.1} parent=1 // pred_check_branch
      %12 = sbr.rel (0) target = $region9
    $region8: #{discriminator_forward.1} parent=1 // pred_region
      %14 = vsyncadd [#allocation4], 0
      %s16 = sshll.u32 %s1, 4
      %s17 = int_to_ptr.vmem [resolvable:$true] %s16
      %19 = dma.vmem_to_smem %s17, 16, [#allocation2], [#allocation4]
    $region9: #{discriminator_forward.1} parent=1 // pred_fallthru
      _
    // Predicated region
    $region10: #{discriminator_forward.1} parent=1 // pred_check
      _
    $region11: #{discriminator_forward.1} parent=1 // pred_check_branch
      %21 = sbr.rel (0) target = $region13
    $region12: #{discriminator_forward.1} parent=1 // pred_region
      %23 = dma.done [#allocation4], 16
    $region13: #{discriminator_forward.1} parent=1 // pred_fallthru
      _
    %24 = sfence
    %v25 = vld [vmem:[%s0] sm:$0x1]
    %s26 = scalar_lea.vmem %s0, 1
    %v27 = vld [vmem:[%s26] sm:$0x1]
    %s28 = sld [smem:[#allocation2]]
    %v29 = vstv %s28
    %v30 = vmul.f32 %v29, %v25
    %s31 = sld [smem:[#allocation2 + $0x4]]
    %v32 = vstv %s31
    %v33 = vadd.f32 %v30, %v32
    %s34 = sld [smem:[#allocation2 + $0x1]]
    %v35 = vstv %s34
    %v36 = vmul.f32 %v35, %v27
    %v37 = vadd.f32 %v33, %v36
    %v38 = vmul.f32 %v37, 0.01
    %v39 = vmax.f32 %v37, %v38
    %s40 = sld [smem:[#allocation2 + $0x2]]
    %v41 = vstv %s40
    %v42 = vmul.f32 %v41, %v25
    %s43 = sld [smem:[#allocation2 + $0x5]]
    %v44 = vstv %s43
    %v45 = vadd.f32 %v42, %v44
    %s46 = sld [smem:[#allocation2 + $0x3]]
    %v47 = vstv %s46
    %v48 = vmul.f32 %v47, %v27
    %v49 = vadd.f32 %v45, %v48
    %v50 = vmul.f32 %v49, 0.01
    %v51 = vmax.f32 %v49, %v50
    %s52 = sld [smem:[#allocation2 + $0x6]]
    %v53 = vstv %s52
    %v54 = vmul.f32 %v53, %v39
    %s55 = sld [smem:[#allocation2 + $0xa]]
    %v56 = vstv %s55
    %v57 = vadd.f32 %v54, %v56
    %s58 = sld [smem:[#allocation2 + $0x7]]
    %v59 = vstv %s58
    %v60 = vmul.f32 %v59, %v51
    %v61 = vadd.f32 %v57, %v60
    %v62 = vmul.f32 %v61, 0.01
    %v63 = vmax.f32 %v61, %v62
    %s64 = sld [smem:[#allocation2 + $0x8]]
    %v65 = vstv %s64
    %v66 = vmul.f32 %v65, %v39
    %s67 = sld [smem:[#allocation2 + $0xb]]
    %v68 = vstv %s67
    %v69 = vadd.f32 %v66, %v68
    %s70 = sld [smem:[#allocation2 + $0x9]]
    %v71 = vstv %s70
    %v72 = vmul.f32 %v71, %v51
    %v73 = vadd.f32 %v69, %v72
    %v74 = vmul.f32 %v73, 0.01
    %v75 = vmax.f32 %v73, %v74
    %s76 = sld [smem:[#allocation2 + $0xc]]
    %v77 = vstv %s76
    %v78 = vmul.f32 %v77, %v63
    %s79 = sld [smem:[#allocation2 + $0x10]]
    %v80 = vstv %s79
    %v81 = vadd.f32 %v78, %v80
    %s82 = sld [smem:[#allocation2 + $0xd]]
    %v83 = vstv %s82
    %v84 = vmul.f32 %v83, %v75
    %v85 = vadd.f32 %v81, %v84
    %v86 = vmul.f32 %v85, 0.01
    %v87 = vmax.f32 %v85, %v86
    %s88 = sld [smem:[#allocation2 + $0xe]]
    %v89 = vstv %s88
    %v90 = vmul.f32 %v89, %v63
    %s91 = sld [smem:[#allocation2 + $0x11]]
    %v92 = vstv %s91
    %v93 = vadd.f32 %v90, %v92
    %s94 = sld [smem:[#allocation2 + $0xf]]
    %v95 = vstv %s94
    %v96 = vmul.f32 %v95, %v75
    %v97 = vadd.f32 %v93, %v96
    %v98 = vmul.f32 %v97, 0.01
    %v99 = vmax.f32 %v97, %v98
    %s100 = sld [smem:[#allocation2 + $0x12]]
    %v101 = vstv %s100
    %v102 = vmul.f32 %v101, %v87
    %s103 = sld [smem:[#allocation2 + $0x16]]
    %v104 = vstv %s103
    %v105 = vadd.f32 %v102, %v104
    %s106 = sld [smem:[#allocation2 + $0x13]]
    %v107 = vstv %s106
    %v108 = vmul.f32 %v107, %v99
    %v109 = vadd.f32 %v105, %v108
    %v110 = vmul.f32 %v109, 0.01
    %v111 = vmax.f32 %v109, %v110
    %s112 = sld [smem:[#allocation2 + $0x14]]
    %v113 = vstv %s112
    %v114 = vmul.f32 %v113, %v87
    %s115 = sld [smem:[#allocation2 + $0x17]]
    %v116 = vstv %s115
    %v117 = vadd.f32 %v114, %v116
    %s118 = sld [smem:[#allocation2 + $0x15]]
    %v119 = vstv %s118
    %v120 = vmul.f32 %v119, %v99
    %v121 = vadd.f32 %v117, %v120
    %v122 = vmul.f32 %v121, 0.01
    %v123 = vmax.f32 %v121, %v122
    %s124 = sld [smem:[#allocation2 + $0x18]]
    %v125 = vstv %s124
    %v126 = vmul.f32 %v125, %v111
    %s127 = sld [smem:[#allocation2 + $0x1a]]
    %v128 = vstv %s127
    %v129 = vadd.f32 %v126, %v128
    %s130 = sld [smem:[#allocation2 + $0x19]]
    %v131 = vstv %s130
    %v132 = vmul.f32 %v131, %v123
    %v133 = vadd.f32 %v129, %v132
    %134 = vst [vmem:[#allocation5] sm:$0x1] %v133
    // Predicated region
    $region14: #{discriminator_forward.1} parent=1 // pred_check
      _
    $region15: #{discriminator_forward.1} parent=1 // pred_check_branch
      %136 = sbr.rel (0) target = $region17
    $region16: #{discriminator_forward.1} parent=1 // pred_region
      %138 = vsyncadd [#allocation3], 0
      %s140 = sshll.u32 [#allocation5], 4
      %s141 = int_to_ptr.vmem [resolvable:$true] %s140
      %s142 = sshll.u32 %s2, 4
      %s143 = int_to_ptr.hbm [resolvable:$true] %s142
      %145 = dma.vmem_to_hbm [thread:$0]  %s141, 16, %s143, [#allocation3]
    $region17: #{discriminator_forward.1} parent=1 // pred_fallthru
      _
    // Predicated region
    $region18: #{discriminator_forward.1} parent=1 // pred_check
      _
    $region19: #{discriminator_forward.1} parent=1 // pred_check_branch
      %147 = sbr.rel (0) target = $region21
    $region20: #{discriminator_forward.1} parent=1 // pred_region
      %149 = dma.done [#allocation3], 16
    $region21: #{discriminator_forward.1} parent=1 // pred_fallthru
      _
    %150 = vsyncpa [#allocation3], 1
    %151 = vsyncpa [#allocation4], 1

</llo_original>
